<compile_context>
chip_gen: v6e
topology: v6e:2x2x1
jax: 0.10.0
libtpu: 0.0.40
codegen_flags: <defaults>
</compile_context>

<pallas_src>
import functools

import jax
import jax.numpy as jnp
from jax.experimental import pallas as pl
from jax.experimental.pallas import tpu as pltpu


def _attention_kernel(hidden_ref, w_ref, b_ref, enc_ref, out_ref, proj_ref,
                      *, seq_len, s_tile):
    # hidden_ref: [Bt, D]       w_ref: [D, D] (nn.Linear layout: [out, in])
    # b_ref:      [1, D]        enc_ref: [Bt, St, D]
    # out_ref:    [Bt, S_pad]   (resident across the S grid axis)
    # proj_ref:   [Bt, D] VMEM scratch (projected hidden, resident across S)
    s = pl.program_id(1)

    # ---- projection: independent of the S axis -> compute once per B tile ----
    @pl.when(s == 0)
    def _():
        # nn.Linear: y = x @ W^T + b, written as a transposed contraction so no
        # in-kernel transpose/relayout of w is needed before the MXU push.
        proj = jax.lax.dot_general(
            hidden_ref[...], w_ref[...],
            dimension_numbers=(((1,), (1,)), ((), ())),
            preferred_element_type=jnp.float32,
        )
        proj_ref[...] = proj + b_ref[...]

    # ---- scores for this S tile: bmm(enc [Bt,St,D], proj [Bt,D,1]) -> [Bt,St] ----
    # VPU multiply + lane reduce (f32 stats even if enc is cast to bf16 upstream).
    scores = jnp.sum(
        enc_ref[...].astype(jnp.float32) * proj_ref[...][:, None, :], axis=-1)
    start = pl.multiple_of(s * s_tile, s_tile)
    out_ref[:, pl.ds(start, s_tile)] = scores

    # ---- softmax over the full (resident) S axis on the last S step ----------
    @pl.when(s == pl.num_programs(1) - 1)
    def _():
        all_scores = out_ref[...]                                  # [Bt, S_pad]
        col = jax.lax.broadcasted_iota(jnp.int32, all_scores.shape, 1)
        all_scores = jnp.where(col < seq_len, all_scores, -jnp.inf)
        m = jnp.max(all_scores, axis=-1, keepdims=True)
        e = jnp.exp(all_scores - m)
        denom = jnp.sum(e, axis=-1, keepdims=True)
        # EUP vrcp (otherwise-idle slot) + one Newton step => ~f32-accurate 1/denom
        # without burning a VPU divide.
        inv = pl.reciprocal(denom, approx=True)
        inv = inv * (2.0 - denom * inv)
        out_ref[...] = (e * inv).astype(out_ref.dtype)


def dot_product_attention(hidden, w, b, encoder_outputs):
    """hidden: [B, 2H], w: [2H, 2H] (nn.Linear weight), b: [2H],
    encoder_outputs: [B, S, 2H]  ->  softmax attention weights [B, S]."""
    B, D = hidden.shape
    S = encoder_outputs.shape[1]

    # Lane-dense output: S stays the last (lane) dim, padded to a 128 multiple.
    s_pad = ((S + 127) // 128) * 128
    # S tile streamed from HBM (double-buffered by the BlockSpec pipeline).
    s_tile = next(t for t in (512, 256, 128) if s_pad % t == 0)
    # B tile: parallel axis for megacore sharding.
    b_tile = 8 if B % 8 == 0 else B

    if s_pad != S:
        encoder_outputs = jnp.pad(
            encoder_outputs, ((0, 0), (0, s_pad - S), (0, 0)))
    b2d = b.reshape(1, D)

    grid = (B // b_tile, s_pad // s_tile)

    # VMEM budget: 2x enc tile (double buffer) + resident w/hidden/bias/proj
    # + revolving output block, with headroom.
    elt = encoder_outputs.dtype.itemsize
    needed = (2 * b_tile * s_tile * D * elt          # enc tiles
              + 2 * D * D * w.dtype.itemsize         # weight
              + 2 * b_tile * D * 4                   # hidden
              + 2 * D * 4                            # bias
              + b_tile * D * 4                       # proj scratch
              + 2 * b_tile * s_pad * 4)              # output block
    vmem_limit = int(min(100 * (1 << 20), 2 * needed + (2 << 20)))

    kernel = functools.partial(_attention_kernel, seq_len=S, s_tile=s_tile)

    out = pl.pallas_call(
        kernel,
        out_shape=jax.ShapeDtypeStruct((B, s_pad), jnp.float32),
        grid_spec=pltpu.PrefetchScalarGridSpec(
            num_scalar_prefetch=0,
            grid=grid,
            in_specs=[
                pl.BlockSpec((b_tile, D), lambda i, s: (i, 0)),            # hidden
                pl.BlockSpec((D, D), lambda i, s: (0, 0)),                 # weight
                pl.BlockSpec((1, D), lambda i, s: (0, 0)),                 # bias
                pl.BlockSpec((b_tile, s_tile, D), lambda i, s: (i, s, 0)), # enc
            ],
            out_specs=pl.BlockSpec((b_tile, s_pad), lambda i, s: (i, 0)),
            scratch_shapes=[pltpu.VMEM((b_tile, D), jnp.float32)],
        ),
        compiler_params=pltpu.CompilerParams(
            dimension_semantics=("parallel", "arbitrary"),
            vmem_limit_bytes=vmem_limit,
        ),
    )(hidden, w, b2d, encoder_outputs)

    return out[:, :S]


def reference(hidden, w, b, encoder_outputs):
    proj = hidden @ w.T + b
    scores = jnp.einsum("bsd,bd->bs", encoder_outputs, proj)
    return jax.nn.softmax(scores, axis=1)


if __name__ == "__main__":
    hidden_dim = 16              # feature dim D = 2*hidden_dim = 32
    D = hidden_dim * 2
    B, S = 2, 8

    key = jax.random.PRNGKey(0)
    k_h, k_e, k_w, k_b = jax.random.split(key, 4)

    hidden = jax.random.normal(k_h, (B, D), dtype=jnp.float32)
    encoder_outputs = jax.random.normal(k_e, (B, S, D), dtype=jnp.float32)

    # Deterministic nn.Linear(D, D) parameters (uniform in [-1/sqrt(D), 1/sqrt(D)]).
    bound = 1.0 / jnp.sqrt(jnp.float32(D))
    w = jax.random.uniform(k_w, (D, D), minval=-bound, maxval=bound, dtype=jnp.float32)
    b = jax.random.uniform(k_b, (D,), minval=-bound, maxval=bound, dtype=jnp.float32)

    out = dot_product_attention(hidden, w, b, encoder_outputs)
    out = jax.block_until_ready(out)

    ref = reference(hidden, w, b, encoder_outputs)
    assert out.shape == (B, S)
    assert jnp.allclose(out, ref, atol=1e-4, rtol=1e-4), "mismatch vs reference"
    assert jnp.allclose(jnp.sum(out, axis=1), 1.0, atol=1e-4), "softmax rows must sum to 1"

    print("KERNEL_OK")
</pallas_src>

<mosaic_0001>
module attributes {stable_mosaic.version = 11 : i64} {
  func.func @_attention_kernel(%arg0: i32, %arg1: i32, %arg2: memref<2x32xf32, #tpu.memory_space<vmem>>, %arg3: memref<32x32xf32, #tpu.memory_space<vmem>>, %arg4: memref<1x32xf32, #tpu.memory_space<vmem>>, %arg5: memref<2x128x32xf32, #tpu.memory_space<vmem>>, %arg6: memref<2x128xf32, #tpu.memory_space<vmem>>, %arg7: memref<2x32xf32, #tpu.memory_space<vmem>>) attributes {dimension_semantics = [#tpu.dimension_semantics<parallel>, #tpu.dimension_semantics<arbitrary>], iteration_bounds = array<i64: 1, 1>, scalar_prefetch = 0 : i64, scratch_operands = 1 : i64, tpu.core_type = #tpu.core_type<tc>, window_params = [{transform_indices = @transform_0, window_bounds = array<i64: 2, 32>}, {pipeline_mode = #tpu.pipeline_mode<synchronous>, transform_indices = @transform_1, window_bounds = array<i64: 32, 32>}, {pipeline_mode = #tpu.pipeline_mode<synchronous>, transform_indices = @transform_2, window_bounds = array<i64: 1, 32>}, {transform_indices = @transform_3, window_bounds = array<i64: 2, 128, 32>}, {transform_indices = @transform_4, window_bounds = array<i64: 2, 128>}]} {
    %c0_i32 = arith.constant 0 : i32
    %0 = arith.cmpi eq, %arg1, %c0_i32 : i32
    %1 = arith.extui %0 : i1 to i32
    %c0_i32_0 = arith.constant 0 : i32
    %2 = arith.cmpi ne, %1, %c0_i32_0 : i32
    scf.if %2 {
      %c0_8 = arith.constant 0 : index
      %c0_9 = arith.constant 0 : index
      %16 = vector.load %arg2[%c0_8, %c0_9] : memref<2x32xf32, #tpu.memory_space<vmem>>, vector<2x32xf32>
      %c0_10 = arith.constant 0 : index
      %c0_11 = arith.constant 0 : index
      %17 = vector.load %arg3[%c0_10, %c0_11] : memref<32x32xf32, #tpu.memory_space<vmem>>, vector<32x32xf32>
      %cst_12 = arith.constant dense<0.000000e+00> : vector<2x32xf32>
      %18 = tpu.matmul %16, %17, %cst_12 {dimension_numbers = #tpu.dot_dimension_numbers<[1], [1], [0], [0], [0, 0, 1, 0], [], []>} : vector<2x32xf32>, vector<32x32xf32>, vector<2x32xf32> -> vector<2x32xf32>
      %c0_13 = arith.constant 0 : index
      %c0_14 = arith.constant 0 : index
      %19 = vector.load %arg4[%c0_13, %c0_14] : memref<1x32xf32, #tpu.memory_space<vmem>>, vector<1x32xf32>
      %20 = vector.broadcast %19 : vector<1x32xf32> to vector<2x32xf32>
      %21 = arith.addf %18, %20 : vector<2x32xf32>
      %c0_15 = arith.constant 0 : index
      %c0_16 = arith.constant 0 : index
      %22 = vector.load %arg7[%c0_15, %c0_16] : memref<2x32xf32, #tpu.memory_space<vmem>>, vector<2x32xf32>
      tpu.vector_store %arg7[%c0_15, %c0_16], %21 {strides = array<i32>} : memref<2x32xf32, #tpu.memory_space<vmem>>, vector<2x32xf32>,
    } else {
    }
    %c0 = arith.constant 0 : index
    %c0_1 = arith.constant 0 : index
    %c0_2 = arith.constant 0 : index
    %3 = vector.load %arg5[%c0, %c0_1, %c0_2] : memref<2x128x32xf32, #tpu.memory_space<vmem>>, vector<2x128x32xf32>
    %c0_3 = arith.constant 0 : index
    %c0_4 = arith.constant 0 : index
    %4 = vector.load %arg7[%c0_3, %c0_4] : memref<2x32xf32, #tpu.memory_space<vmem>>, vector<2x32xf32>
    %5 = vector.shape_cast %4 : vector<2x32xf32> to vector<2x1x32xf32>
    %6 = vector.broadcast %5 : vector<2x1x32xf32> to vector<2x128x32xf32>
    %7 = arith.mulf %3, %6 : vector<2x128x32xf32>
    %cst = arith.constant dense<0.000000e+00> : vector<2x128xf32>
    %8 = vector.multi_reduction <add>, %7, %cst [2] : vector<2x128x32xf32> to vector<2x128xf32>
    %c128_i32 = arith.constant 128 : i32
    %9 = arith.muli %arg1, %c128_i32 : i32
    %10 = tpu.assume_multiple %9, 128 : i32
    %c0_5 = arith.constant 0 : index
    %11 = arith.index_cast %10 : i32 to index
    %12 = vector.load %arg6[%c0_5, %11] : memref<2x128xf32, #tpu.memory_space<vmem>>, vector<2x128xf32>
    tpu.vector_store %arg6[%c0_5, %11], %8 {strides = array<i32>} : memref<2x128xf32, #tpu.memory_space<vmem>>, vector<2x128xf32>,
    %c0_i32_6 = arith.constant 0 : i32
    %13 = arith.cmpi eq, %arg1, %c0_i32_6 : i32
    %14 = arith.extui %13 : i1 to i32
    %c0_i32_7 = arith.constant 0 : i32
    %15 = arith.cmpi ne, %14, %c0_i32_7 : i32
    scf.if %15 {
      %c0_8 = arith.constant 0 : index
      %c0_9 = arith.constant 0 : index
      %16 = vector.load %arg6[%c0_8, %c0_9] : memref<2x128xf32, #tpu.memory_space<vmem>>, vector<2x128xf32>
      %17 = tpu.iota {dimensions = array<i32: 1>} : vector<2x128xi32>
      %c8_i32 = arith.constant 8 : i32
      %18 = vector.broadcast %c8_i32 : i32 to vector<2x128xi32>
      %19 = arith.cmpi slt, %17, %18 : vector<2x128xi32>
      %cst_10 = arith.constant 0xFF800000 : f32
      %20 = vector.broadcast %cst_10 : f32 to vector<2x128xf32>
      %21 = arith.select %19, %16, %20 : vector<2x128xi1>, vector<2x128xf32>
      %cst_11 = arith.constant dense<0xFF800000> : vector<2xf32>
      %22 = vector.multi_reduction <maximumf>, %21, %cst_11 [1] : vector<2x128xf32> to vector<2xf32>
      %23 = vector.shape_cast %22 : vector<2xf32> to vector<2x1xf32>
      %24 = vector.broadcast %23 : vector<2x1xf32> to vector<2x128xf32>
      %25 = arith.subf %21, %24 : vector<2x128xf32>
      %26 = math.exp %25 : vector<2x128xf32>
      %cst_12 = arith.constant dense<0.000000e+00> : vector<2xf32>
      %27 = vector.multi_reduction <add>, %26, %cst_12 [1] : vector<2x128xf32> to vector<2xf32>
      %28 = vector.shape_cast %27 : vector<2xf32> to vector<2x1xf32>
      %29 = tpu.reciprocal %28 {approx = true} : vector<2x1xf32> -> vector<2x1xf32>
      %30 = arith.mulf %28, %29 : vector<2x1xf32>
      %cst_13 = arith.constant 2.000000e+00 : f32
      %31 = vector.broadcast %cst_13 : f32 to vector<2x1xf32>
      %32 = arith.subf %31, %30 : vector<2x1xf32>
      %33 = arith.mulf %29, %32 : vector<2x1xf32>
      %34 = vector.broadcast %33 : vector<2x1xf32> to vector<2x128xf32>
      %35 = arith.mulf %26, %34 : vector<2x128xf32>
      %c0_14 = arith.constant 0 : index
      %c0_15 = arith.constant 0 : index
      %36 = vector.load %arg6[%c0_14, %c0_15] : memref<2x128xf32, #tpu.memory_space<vmem>>, vector<2x128xf32>
      tpu.vector_store %arg6[%c0_14, %c0_15], %35 {strides = array<i32>} : memref<2x128xf32, #tpu.memory_space<vmem>>, vector<2x128xf32>,
    } else {
    }
    return
  }
  func.func @transform_0(%arg0: i32, %arg1: i32) -> (i32, i32) {
    %c0_i32 = arith.constant 0 : i32
    %c0_i32_0 = arith.constant 0 : i32
    return %arg0, %c0_i32 : i32, i32
  }
  func.func @transform_1(%arg0: i32, %arg1: i32) -> (i32, i32) {
    %c0_i32 = arith.constant 0 : i32
    %c0_i32_0 = arith.constant 0 : i32
    %c0_i32_1 = arith.constant 0 : i32
    return %c0_i32, %c0_i32_0 : i32, i32
  }
  func.func @transform_2(%arg0: i32, %arg1: i32) -> (i32, i32) {
    %c0_i32 = arith.constant 0 : i32
    %c0_i32_0 = arith.constant 0 : i32
    %c0_i32_1 = arith.constant 0 : i32
    return %c0_i32, %c0_i32_0 : i32, i32
  }
  func.func @transform_3(%arg0: i32, %arg1: i32) -> (i32, i32, i32) {
    %c0_i32 = arith.constant 0 : i32
    %c0_i32_0 = arith.constant 0 : i32
    return %arg0, %arg1, %c0_i32 : i32, i32, i32
  }
  func.func @transform_4(%arg0: i32, %arg1: i32) -> (i32, i32) {
    %c0_i32 = arith.constant 0 : i32
    %c0_i32_0 = arith.constant 0 : i32
    return %arg0, %c0_i32 : i32, i32
  }
}

</mosaic_0001>

<llo_original>
// kernel: tpu_custom_call.1
$region0: #{tpu_custom_call.1}
  #allocation0 [shape = 'u32[]', space=smem, size = 0x4, offset = 0x4, fixed_abs, tag = 'smem constant byte address 0x4 - core index']
  #allocation1 [shape = 'u32[144,128]{1,0:T(1,128)}', space=vmem, size = 0x12000, scoped, tag = 'internal scratch']
  #allocation2 [shape = 'f32[2,32]{1,0:T(2,128)}', space=vmem, size = 0x400, scoped, tag = 'scratch operand']
  %s0 = inlined_call_operand.vmem [shape: f32[2,32], index: 0, kind: input, shape index: {}]
  %s1 = inlined_call_operand.vmem [shape: f32[32,32], index: 1, kind: input, shape index: {}]
  %s2 = inlined_call_operand.vmem [shape: f32[1,32], index: 2, kind: input, shape index: {}]
  %s3 = inlined_call_operand.vmem [shape: f32[2,128,32], index: 3, kind: input, shape index: {}]
  %s4 = inlined_call_operand.hbm [shape: f32[2,128], index: 4, kind: output, shape index: {}]
  %s5 = sld [smem:[#allocation0]]
  $region34: #{tpu_custom_call.1} parent=0
    _
  %s7 = ssub.s32 1, %s5
  %s8 = scalar_select 0, %s7, %s5
  $region1: #{tpu_custom_call.1} parent=0
    #allocation3 [shape = 'u8[1024]{0}', space=vmem, size = 0x400, scoped, tag = 'output window, operand 0, single buffered']
    #allocation4 [shape = 's32[1]{0}', space=sflag, size = 0x4, scoped, tag = 'scoped memory for tpu_custom_call.1']
    %9 = vsyncpa [#allocation4], 0
    // Predicated region
    $region2: #{tpu_custom_call.1} parent=1 // pred_check
      _
    $region3: #{tpu_custom_call.1} parent=1 // pred_check_branch
      %11 = sbr.rel (0) target = $region5
    $region4: #{tpu_custom_call.1} parent=1 // pred_region
      _
    $region5: #{tpu_custom_call.1} parent=1 // pred_fallthru
      _
    // Predicated region
    $region6: #{tpu_custom_call.1} parent=1 // pred_check
      _
    $region7: #{tpu_custom_call.1} parent=1 // pred_check_branch
      %13 = sbr.rel (0) target = $region9
    $region8: #{tpu_custom_call.1} parent=1 // pred_region
      _
    $region9: #{tpu_custom_call.1} parent=1 // pred_fallthru
      _
    // Predicated region
    $region10: #{tpu_custom_call.1} parent=1 // pred_check
      _
    $region11: #{tpu_custom_call.1} parent=1 // pred_check_branch
      %15 = sbr.rel (0) target = $region13
    $region12: #{tpu_custom_call.1} parent=1 // pred_region
      _
    $region13: #{tpu_custom_call.1} parent=1 // pred_fallthru
      _
    // Predicated region
    $region14: #{tpu_custom_call.1} parent=1 // pred_check
      _
    $region15: #{tpu_custom_call.1} parent=1 // pred_check_branch
      %17 = sbr.rel (0) target = $region17
    $region16: #{tpu_custom_call.1} parent=1 // pred_region
      _
    $region17: #{tpu_custom_call.1} parent=1 // pred_fallthru
      _
    %p18 = scmp.eq.s32.totalorder 0, 0
    // Predicated region
    $region18: #{tpu_custom_call.1} parent=1 // pred_check
      %p19 = pneg %p18
    $region19: #{tpu_custom_call.1} parent=1 // pred_check_branch
      %21 = sbr.rel (%p19) target = $region21
    $region20: #{tpu_custom_call.1} parent=1 // pred_region
      %v22 = vld [vmem:[%s0] sm:$0x3]
      %v23 = vld [vmem:[%s1] sm:$0xff]
      %v24 = vld [vmem:[%s1 + $0x8] sm:$0xff]
      %v25 = vld [vmem:[%s1 + $0x10] sm:$0xff]
      %v26 = vld [vmem:[%s1 + $0x18] sm:$0xff]
      %v27 = vld [vmem:[%s2] sm:$0x1]
      %v29 = vlaneseq
      %v30 = vshrl.u32 %v29, 7
      %v31 = vsub.s32 0, %v30
      %v32 = vrot.slane %v27, %v31
      %vm34 = vcmask 261120
      %v36 = vsel %vm34, %v22, 0
      %v39 = vsel %vm34, %v23, 0
      %v42 = vsel %vm34, %v24, 0
      %v45 = vsel %vm34, %v25, 0
      %v48 = vsel %vm34, %v26, 0
      %50 = vmatprep.subr.mxu0 0.0
      %51 = vmatpush1.xpose.msra.mxu0 0.0
      %52 = vmatprep.subr.mxu0 0.0
      %53 = vmatpush1.xpose.msra.mxu0 0.0
      %54 = vmatprep.subr.mxu0 0.0
      %55 = vmatpush1.xpose.msra.mxu0 0.0
      %56 = vmatprep.subr.mxu0 0.0
      %57 = vmatpush1.xpose.msra.mxu0 0.0
      %58 = vmatprep.subr.mxu0 0.0
      %59 = vmatpush1.xpose.msra.mxu0 0.0
      %60 = vmatprep.subr.mxu0 0.0
      %61 = vmatpush1.xpose.msra.mxu0 0.0
      %62 = vmatprep.subr.mxu0 0.0
      %63 = vmatpush1.xpose.msra.mxu0 0.0
      %64 = vmatprep.subr.mxu0 0.0
      %65 = vmatpush1.xpose.msra.mxu0 0.0
      %66 = vmatprep.subr.mxu0 0.0
      %67 = vmatpush1.xpose.msra.mxu0 0.0
      %68 = vmatprep.subr.mxu0 0.0
      %69 = vmatpush1.xpose.msra.mxu0 0.0
      %70 = vmatprep.subr.mxu0 0.0
      %71 = vmatpush1.xpose.msra.mxu0 0.0
      %72 = vmatprep.subr.mxu0 0.0
      %73 = vmatpush1.xpose.msra.mxu0 0.0
      %74 = vmatprep.subr.mxu0 0.0
      %75 = vmatpush1.xpose.msra.mxu0 %v48
      %76 = vmatprep.subr.mxu0 0.0
      %77 = vmatpush1.xpose.msra.mxu0 %v45
      %78 = vmatprep.subr.mxu0 0.0
      %79 = vmatpush1.xpose.msra.mxu0 %v42
      %80 = vmatprep.subr.mxu0 0.0
      %81 = vmatpush1.xpose.msra.mxu0 %v39
      %82 = vmatprep.subr.mxu0 0.0
      %83 = vmatpush2.xpose.msra.mxu0 0.0
      %84 = vmatprep.subr.mxu0 0.0
      %85 = vmatpush2.xpose.msra.mxu0 0.0
      %86 = vmatprep.subr.mxu0 0.0
      %87 = vmatpush2.xpose.msra.mxu0 0.0
      %88 = vmatprep.subr.mxu0 0.0
      %89 = vmatpush2.xpose.msra.mxu0 0.0
      %90 = vmatprep.subr.mxu0 0.0
      %91 = vmatpush2.xpose.msra.mxu0 0.0
      %92 = vmatprep.subr.mxu0 0.0
      %93 = vmatpush2.xpose.msra.mxu0 0.0
      %94 = vmatprep.subr.mxu0 0.0
      %95 = vmatpush2.xpose.msra.mxu0 0.0
      %96 = vmatprep.subr.mxu0 0.0
      %97 = vmatpush2.xpose.msra.mxu0 0.0
      %98 = vmatprep.subr.mxu0 0.0
      %99 = vmatpush2.xpose.msra.mxu0 0.0
      %100 = vmatprep.subr.mxu0 0.0
      %101 = vmatpush2.xpose.msra.mxu0 0.0
      %102 = vmatprep.subr.mxu0 0.0
      %103 = vmatpush2.xpose.msra.mxu0 0.0
      %104 = vmatprep.subr.mxu0 0.0
      %105 = vmatpush2.xpose.msra.mxu0 0.0
      %106 = vmatprep.subr.mxu0 0.0
      %107 = vmatpush2.xpose.msra.mxu0 0.0
      %108 = vmatprep.subr.mxu0 0.0
      %109 = vmatpush2.xpose.msra.mxu0 0.0
      %110 = vmatprep.subr.mxu0 0.0
      %111 = vmatpush2.xpose.msra.mxu0 0.0
      %112 = vmatprep.subr.mxu0 0.0
      %113 = vmatpush2.xpose.msra.mxu0 0.0
      %114 = vmatprep.mubr.f32.mxu0 0.0
      %115 = vmatmul.mubr.f32.gmra.mxu0 %v36
      %v116 = vpop.f32.mrf.mxu0
      %v117 = vadd.f32 %v32, %v116
      %v118 = vpop.f32.mrf.mxu0
      %119 = vdwg.mxu0
      %vm120 = vcmask 254976
      %121 = vst.msk [vmem:[#allocation2] sm:$0x3] %vm120, %v117
    $region21: #{tpu_custom_call.1} parent=1 // pred_fallthru
      _
    %v122 = vld [vmem:[%s3] sm:$0xff]
    %v123 = vld [vmem:[%s3 + $0x8] sm:$0xff]
    %v124 = vld [vmem:[%s3 + $0x10] sm:$0xff]
    %v125 = vld [vmem:[%s3 + $0x18] sm:$0xff]
    %v126 = vld [vmem:[%s3 + $0x20] sm:$0xff]
    %v127 = vld [vmem:[%s3 + $0x28] sm:$0xff]
    %v128 = vld [vmem:[%s3 + $0x30] sm:$0xff]
    %v129 = vld [vmem:[%s3 + $0x38] sm:$0xff]
    %v130 = vld [vmem:[%s3 + $0x40] sm:$0xff]
    %v131 = vld [vmem:[%s3 + $0x48] sm:$0xff]
    %v132 = vld [vmem:[%s3 + $0x50] sm:$0xff]
    %v133 = vld [vmem:[%s3 + $0x58] sm:$0xff]
    %v134 = vld [vmem:[%s3 + $0x60] sm:$0xff]
    %v135 = vld [vmem:[%s3 + $0x68] sm:$0xff]
    %v136 = vld [vmem:[%s3 + $0x70] sm:$0xff]
    %v137 = vld [vmem:[%s3 + $0x78] sm:$0xff]
    %v138 = vld [vmem:[%s3 + $0x80] sm:$0xff]
    %v139 = vld [vmem:[%s3 + $0x88] sm:$0xff]
    %v140 = vld [vmem:[%s3 + $0x90] sm:$0xff]
    %v141 = vld [vmem:[%s3 + $0x98] sm:$0xff]
    %v142 = vld [vmem:[%s3 + $0xa0] sm:$0xff]
    %v143 = vld [vmem:[%s3 + $0xa8] sm:$0xff]
    %v144 = vld [vmem:[%s3 + $0xb0] sm:$0xff]
    %v145 = vld [vmem:[%s3 + $0xb8] sm:$0xff]
    %v146 = vld [vmem:[%s3 + $0xc0] sm:$0xff]
    %v147 = vld [vmem:[%s3 + $0xc8] sm:$0xff]
    %v148 = vld [vmem:[%s3 + $0xd0] sm:$0xff]
    %v149 = vld [vmem:[%s3 + $0xd8] sm:$0xff]
    %v150 = vld [vmem:[%s3 + $0xe0] sm:$0xff]
    %v151 = vld [vmem:[%s3 + $0xe8] sm:$0xff]
    %v152 = vld [vmem:[%s3 + $0xf0] sm:$0xff]
    %v153 = vld [vmem:[%s3 + $0xf8] sm:$0xff]
    %v154 = vld [vmem:[#allocation2] sm:$0x3]
    %v157 = vunpack.c.l.s4 1966171168
    %v158 = vunpack.c.0.s8 %v157
    %v159 = vlaneseq
    %v160 = vshrl.u32 %v159, 7
    %v161 = vsub.s32 %v158, %v160
    %v162 = vrot.slane %v154, %v161
    %v163 = vcombine.high %v162, %v162
    %v165 = vunpack.c.l.s4 1966171168
    %v166 = vunpack.c.0.s8 %v165
    %v167 = vlaneseq
    %v168 = vshrl.u32 %v167, 7
    %v169 = vsub.s32 %v166, %v168
    %v170 = vrot.slane %v162, %v169
    %v172 = vunpack.c.l.s4 1966171168
    %v173 = vunpack.c.0.s8 %v172
    %v174 = vlaneseq
    %v175 = vshrl.u32 %v174, 7
    %v176 = vsub.s32 %v173, %v175
    %v177 = vrot.slane %v163, %v176
    %v178 = vlaneseq
    %v179 = vshrl.u32 %v178, 7
    %v180 = vsub.s32 0, %v179
    %v181 = vrot.slane %v170, %v180
    %v182 = vlaneseq
    %v183 = vshrl.u32 %v182, 7
    %v184 = vsub.s32 0, %v183
    %v185 = vrot.slane %v177, %v184
    %v188 = vmul.f32 %v122, %v181
    %v189 = vmul.f32 %v123, %v181
    %v190 = vmul.f32 %v124, %v181
    %v191 = vmul.f32 %v125, %v181
    %v192 = vmul.f32 %v126, %v181
    %v193 = vmul.f32 %v127, %v181
    %v194 = vmul.f32 %v128, %v181
    %v195 = vmul.f32 %v129, %v181
    %v196 = vmul.f32 %v130, %v181
    %v197 = vmul.f32 %v131, %v181
    %v198 = vmul.f32 %v132, %v181
    %v199 = vmul.f32 %v133, %v181
    %v200 = vmul.f32 %v134, %v181
    %v201 = vmul.f32 %v135, %v181
    %v202 = vmul.f32 %v136, %v181
    %v203 = vmul.f32 %v137, %v181
    %v204 = vmul.f32 %v138, %v185
    %v205 = vmul.f32 %v139, %v185
    %v206 = vmul.f32 %v140, %v185
    %v207 = vmul.f32 %v141, %v185
    %v208 = vmul.f32 %v142, %v185
    %v209 = vmul.f32 %v143, %v185
    %v210 = vmul.f32 %v144, %v185
    %v211 = vmul.f32 %v145, %v185
    %v212 = vmul.f32 %v146, %v185
    %v213 = vmul.f32 %v147, %v185
    %v214 = vmul.f32 %v148, %v185
    %v215 = vmul.f32 %v149, %v185
    %v216 = vmul.f32 %v150, %v185
    %v217 = vmul.f32 %v151, %v185
    %v218 = vmul.f32 %v152, %v185
    %v219 = vmul.f32 %v153, %v185
    %vm220 = vcmask 261120
    %v221 = vsel %vm220, %v188, 0.0
    %222 = vadd.xlane.f32.xlu0 %v221
    %v223 = vpop.xlane.xlu0 %222
    %v224 = vsel %vm220, %v189, 0.0
    %225 = vadd.xlane.f32.xlu0 %v224
    %v226 = vpop.xlane.xlu0 %225
    %v227 = vsel %vm220, %v190, 0.0
    %228 = vadd.xlane.f32.xlu0 %v227
    %v229 = vpop.xlane.xlu0 %228
    %v230 = vsel %vm220, %v191, 0.0
    %231 = vadd.xlane.f32.xlu0 %v230
    %v232 = vpop.xlane.xlu0 %231
    %v233 = vsel %vm220, %v192, 0.0
    %234 = vadd.xlane.f32.xlu0 %v233
    %v235 = vpop.xlane.xlu0 %234
    %v236 = vsel %vm220, %v193, 0.0
    %237 = vadd.xlane.f32.xlu0 %v236
    %v238 = vpop.xlane.xlu0 %237
    %v239 = vsel %vm220, %v194, 0.0
    %240 = vadd.xlane.f32.xlu0 %v239
    %v241 = vpop.xlane.xlu0 %240
    %v242 = vsel %vm220, %v195, 0.0
    %243 = vadd.xlane.f32.xlu0 %v242
    %v244 = vpop.xlane.xlu0 %243
    %v245 = vsel %vm220, %v196, 0.0
    %246 = vadd.xlane.f32.xlu0 %v245
    %v247 = vpop.xlane.xlu0 %246
    %v248 = vsel %vm220, %v197, 0.0
    %249 = vadd.xlane.f32.xlu0 %v248
    %v250 = vpop.xlane.xlu0 %249
    %v251 = vsel %vm220, %v198, 0.0
    %252 = vadd.xlane.f32.xlu0 %v251
    %v253 = vpop.xlane.xlu0 %252
    %v254 = vsel %vm220, %v199, 0.0
    %255 = vadd.xlane.f32.xlu0 %v254
    %v256 = vpop.xlane.xlu0 %255
    %v257 = vsel %vm220, %v200, 0.0
    %258 = vadd.xlane.f32.xlu0 %v257
    %v259 = vpop.xlane.xlu0 %258
    %v260 = vsel %vm220, %v201, 0.0
    %261 = vadd.xlane.f32.xlu0 %v260
    %v262 = vpop.xlane.xlu0 %261
    %v263 = vsel %vm220, %v202, 0.0
    %264 = vadd.xlane.f32.xlu0 %v263
    %v265 = vpop.xlane.xlu0 %264
    %v266 = vsel %vm220, %v203, 0.0
    %267 = vadd.xlane.f32.xlu0 %v266
    %v268 = vpop.xlane.xlu0 %267
    %v269 = vsel %vm220, %v204, 0.0
    %270 = vadd.xlane.f32.xlu0 %v269
    %v271 = vpop.xlane.xlu0 %270
    %v272 = vsel %vm220, %v205, 0.0
    %273 = vadd.xlane.f32.xlu0 %v272
    %v274 = vpop.xlane.xlu0 %273
    %v275 = vsel %vm220, %v206, 0.0
    %276 = vadd.xlane.f32.xlu0 %v275
    %v277 = vpop.xlane.xlu0 %276
    %v278 = vsel %vm220, %v207, 0.0
    %279 = vadd.xlane.f32.xlu0 %v278
    %v280 = vpop.xlane.xlu0 %279
    %v281 = vsel %vm220, %v208, 0.0
    %282 = vadd.xlane.f32.xlu0 %v281
    %v283 = vpop.xlane.xlu0 %282
    %v284 = vsel %vm220, %v209, 0.0
    %285 = vadd.xlane.f32.xlu0 %v284
    %v286 = vpop.xlane.xlu0 %285
    %v287 = vsel %vm220, %v210, 0.0
    %288 = vadd.xlane.f32.xlu0 %v287
    %v289 = vpop.xlane.xlu0 %288
    %v290 = vsel %vm220, %v211, 0.0
    %291 = vadd.xlane.f32.xlu0 %v290
    %v292 = vpop.xlane.xlu0 %291
    %v293 = vsel %vm220, %v212, 0.0
    %294 = vadd.xlane.f32.xlu0 %v293
    %v295 = vpop.xlane.xlu0 %294
    %v296 = vsel %vm220, %v213, 0.0
    %297 = vadd.xlane.f32.xlu0 %v296
    %v298 = vpop.xlane.xlu0 %297
    %v299 = vsel %vm220, %v214, 0.0
    %300 = vadd.xlane.f32.xlu0 %v299
    %v301 = vpop.xlane.xlu0 %300
    %v302 = vsel %vm220, %v215, 0.0
    %303 = vadd.xlane.f32.xlu0 %v302
    %v304 = vpop.xlane.xlu0 %303
    %v305 = vsel %vm220, %v216, 0.0
    %306 = vadd.xlane.f32.xlu0 %v305
    %v307 = vpop.xlane.xlu0 %306
    %v308 = vsel %vm220, %v217, 0.0
    %309 = vadd.xlane.f32.xlu0 %v308
    %v310 = vpop.xlane.xlu0 %309
    %v311 = vsel %vm220, %v218, 0.0
    %312 = vadd.xlane.f32.xlu0 %v311
    %v313 = vpop.xlane.xlu0 %312
    %v314 = vsel %vm220, %v219, 0.0
    %315 = vadd.xlane.f32.xlu0 %v314
    %v316 = vpop.xlane.xlu0 %315
    %s317 = smul.u32 0, 128
    %v350 = vlaneseq
    %v351 = vand.u32 %v350, 127
    %v352 = vlaneseq
    %v353 = vshrl.u32 %v352, 7
    %v354 = vsub.s32 %v351, %v353
    %v355 = vrot.slane %v223, %v354
    %v356 = vadd.s32 %v351, 4294967288
    %v357 = vlaneseq
    %v358 = vshrl.u32 %v357, 7
    %v359 = vsub.s32 %v356, %v358
    %v360 = vrot.slane %v226, %v359
    %vm361 = vcmask 130112
    %v362 = vsel %vm361, %v360, %v355
    %v363 = vadd.s32 %v351, 4294967280
    %v364 = vlaneseq
    %v365 = vshrl.u32 %v364, 7
    %v366 = vsub.s32 %v363, %v365
    %v367 = vrot.slane %v229, %v366
    %vm368 = vcmask 195712
    %v369 = vsel %vm368, %v367, %v362
    %v370 = vadd.s32 %v351, 4294967272
    %v371 = vlaneseq
    %v372 = vshrl.u32 %v371, 7
    %v373 = vsub.s32 %v370, %v372
    %v374 = vrot.slane %v232, %v373
    %vm375 = vcmask 261312
    %v376 = vsel %vm375, %v374, %v369
    %v377 = vadd.s32 %v351, 4294967264
    %v378 = vlaneseq
    %v379 = vshrl.u32 %v378, 7
    %v380 = vsub.s32 %v377, %v379
    %v381 = vrot.slane %v235, %v380
    %vm382 = vcmask 326912
    %v383 = vsel %vm382, %v381, %v376
    %v384 = vadd.s32 %v351, 4294967256
    %v385 = vlaneseq
    %v386 = vshrl.u32 %v385, 7
    %v387 = vsub.s32 %v384, %v386
    %v388 = vrot.slane %v238, %v387
    %vm389 = vcmask 392512
    %v390 = vsel %vm389, %v388, %v383
    %v391 = vadd.s32 %v351, 4294967248
    %v392 = vlaneseq
    %v393 = vshrl.u32 %v392, 7
    %v394 = vsub.s32 %v391, %v393
    %v395 = vrot.slane %v241, %v394
    %vm396 = vcmask 458112
    %v397 = vsel %vm396, %v395, %v390
    %v398 = vadd.s32 %v351, 4294967240
    %v399 = vlaneseq
    %v400 = vshrl.u32 %v399, 7
    %v401 = vsub.s32 %v398, %v400
    %v402 = vrot.slane %v244, %v401
    %vm403 = vcmask 523712
    %v404 = vsel %vm403, %v402, %v397
    %v405 = vadd.s32 %v351, 4294967232
    %v406 = vlaneseq
    %v407 = vshrl.u32 %v406, 7
    %v408 = vsub.s32 %v405, %v407
    %v409 = vrot.slane %v247, %v408
    %vm410 = vcmask 589312
    %v411 = vsel %vm410, %v409, %v404
    %v412 = vadd.s32 %v351, 4294967224
    %v413 = vlaneseq
    %v414 = vshrl.u32 %v413, 7
    %v415 = vsub.s32 %v412, %v414
    %v416 = vrot.slane %v250, %v415
    %vm417 = vcmask 654912
    %v418 = vsel %vm417, %v416, %v411
    %v419 = vadd.s32 %v351, 4294967216
    %v420 = vlaneseq
    %v421 = vshrl.u32 %v420, 7
    %v422 = vsub.s32 %v419, %v421
    %v423 = vrot.slane %v253, %v422
    %vm424 = vcmask 720512
    %v425 = vsel %vm424, %v423, %v418
    %v426 = vadd.s32 %v351, 4294967208
    %v427 = vlaneseq
    %v428 = vshrl.u32 %v427, 7
    %v429 = vsub.s32 %v426, %v428
    %v430 = vrot.slane %v256, %v429
    %vm431 = vcmask 786112
    %v432 = vsel %vm431, %v430, %v425
    %v433 = vadd.s32 %v351, 4294967200
    %v434 = vlaneseq
    %v435 = vshrl.u32 %v434, 7
    %v436 = vsub.s32 %v433, %v435
    %v437 = vrot.slane %v259, %v436
    %vm438 = vcmask 851712
    %v439 = vsel %vm438, %v437, %v432
    %v440 = vadd.s32 %v351, 4294967192
    %v441 = vlaneseq
    %v442 = vshrl.u32 %v441, 7
    %v443 = vsub.s32 %v440, %v442
    %v444 = vrot.slane %v262, %v443
    %vm445 = vcmask 917312
    %v446 = vsel %vm445, %v444, %v439
    %v447 = vadd.s32 %v351, 4294967184
    %v448 = vlaneseq
    %v449 = vshrl.u32 %v448, 7
    %v450 = vsub.s32 %v447, %v449
    %v451 = vrot.slane %v265, %v450
    %vm452 = vcmask 982912
    %v453 = vsel %vm452, %v451, %v446
    %v454 = vadd.s32 %v351, 4294967176
    %v455 = vlaneseq
    %v456 = vshrl.u32 %v455, 7
    %v457 = vsub.s32 %v454, %v456
    %v458 = vrot.slane %v268, %v457
    %vm459 = vcmask 1048512
    %v460 = vsel %vm459, %v458, %v453
    %v461 = vlaneseq
    %v462 = vshrl.u32 %v461, 7
    %v463 = vsub.s32 %v351, %v462
    %v464 = vrot.slane %v271, %v463
    %v465 = vlaneseq
    %v466 = vshrl.u32 %v465, 7
    %v467 = vsub.s32 %v356, %v466
    %v468 = vrot.slane %v274, %v467
    %v469 = vsel %vm361, %v468, %v464
    %v470 = vlaneseq
    %v471 = vshrl.u32 %v470, 7
    %v472 = vsub.s32 %v363, %v471
    %v473 = vrot.slane %v277, %v472
    %v474 = vsel %vm368, %v473, %v469
    %v475 = vlaneseq
    %v476 = vshrl.u32 %v475, 7
    %v477 = vsub.s32 %v370, %v476
    %v478 = vrot.slane %v280, %v477
    %v479 = vsel %vm375, %v478, %v474
    %v480 = vlaneseq
    %v481 = vshrl.u32 %v480, 7
    %v482 = vsub.s32 %v377, %v481
    %v483 = vrot.slane %v283, %v482
    %v484 = vsel %vm382, %v483, %v479
    %v485 = vlaneseq
    %v486 = vshrl.u32 %v485, 7
    %v487 = vsub.s32 %v384, %v486
    %v488 = vrot.slane %v286, %v487
    %v489 = vsel %vm389, %v488, %v484
    %v490 = vlaneseq
    %v491 = vshrl.u32 %v490, 7
    %v492 = vsub.s32 %v391, %v491
    %v493 = vrot.slane %v289, %v492
    %v494 = vsel %vm396, %v493, %v489
    %v495 = vlaneseq
    %v496 = vshrl.u32 %v495, 7
    %v497 = vsub.s32 %v398, %v496
    %v498 = vrot.slane %v292, %v497
    %v499 = vsel %vm403, %v498, %v494
    %v500 = vlaneseq
    %v501 = vshrl.u32 %v500, 7
    %v502 = vsub.s32 %v405, %v501
    %v503 = vrot.slane %v295, %v502
    %v504 = vsel %vm410, %v503, %v499
    %v505 = vlaneseq
    %v506 = vshrl.u32 %v505, 7
    %v507 = vsub.s32 %v412, %v506
    %v508 = vrot.slane %v298, %v507
    %v509 = vsel %vm417, %v508, %v504
    %v510 = vlaneseq
    %v511 = vshrl.u32 %v510, 7
    %v512 = vsub.s32 %v419, %v511
    %v513 = vrot.slane %v301, %v512
    %v514 = vsel %vm424, %v513, %v509
    %v515 = vlaneseq
    %v516 = vshrl.u32 %v515, 7
    %v517 = vsub.s32 %v426, %v516
    %v518 = vrot.slane %v304, %v517
    %v519 = vsel %vm431, %v518, %v514
    %v520 = vlaneseq
    %v521 = vshrl.u32 %v520, 7
    %v522 = vsub.s32 %v433, %v521
    %v523 = vrot.slane %v307, %v522
    %v524 = vsel %vm438, %v523, %v519
    %v525 = vlaneseq
    %v526 = vshrl.u32 %v525, 7
    %v527 = vsub.s32 %v440, %v526
    %v528 = vrot.slane %v310, %v527
    %v529 = vsel %vm445, %v528, %v524
    %v530 = vlaneseq
    %v531 = vshrl.u32 %v530, 7
    %v532 = vsub.s32 %v447, %v531
    %v533 = vrot.slane %v313, %v532
    %v534 = vsel %vm452, %v533, %v529
    %v535 = vlaneseq
    %v536 = vshrl.u32 %v535, 7
    %v537 = vsub.s32 %v454, %v536
    %v538 = vrot.slane %v316, %v537
    %v539 = vsel %vm459, %v538, %v534
    %vm540 = vcmask 1041409
    %v541 = vsel %vm540, %v539, %v460
    %s543 = sshra.s32 %s317, 7
    %s544 = sand.u32 %s317, 127
    %s545 = scalar_lea.vmem [#allocation3], %s543
    %546 = vst [vmem:[%s545] sm:$0x3] %v541
    // Predicated region
    $region22: #{tpu_custom_call.1} parent=1 // pred_check
      %p547 = pneg %p18
    $region23: #{tpu_custom_call.1} parent=1 // pred_check_branch
      %549 = sbr.rel (%p547) target = $region25
    $region24: #{tpu_custom_call.1} parent=1 // pred_region
      %v550 = vld [vmem:[#allocation3] sm:$0x3]
      %vm551 = vcmp.lt.s32.totalorder %v351, 8
      %v552 = vsel %vm551, %v550, -inf
      %vm553 = vcmask 1041408
      %v554 = vsel %vm553, %v552, -inf
      %555 = vmax.xlane.f32.xlu0 %v554
      %v556 = vpop.xlane.xlu0 %555
      %v557 = vsub.f32 %v552, %v556
      %v558 = vmul.f32 %v557, 1.442695
      %v559 = vpow.pop %v558
      %v560 = vsel %vm553, %v559, 0.0
      %561 = vadd.xlane.f32.xlu0 %v560
      %v562 = vpop.xlane.xlu0 %561
      %v563 = vrcp.pop %v562
      %v564 = vmul.f32 %v562, %v563
      %v565 = vsub.f32 2.0, %v564
      %v566 = vmul.f32 %v563, %v565
      %v567 = vmul.f32 %v559, %v566
      %568 = vst [vmem:[#allocation3] sm:$0x3] %v567
    $region25: #{tpu_custom_call.1} parent=1 // pred_fallthru
      _
    // Predicated region
    $region26: #{tpu_custom_call.1} parent=1 // pred_check
      _
    $region27: #{tpu_custom_call.1} parent=1 // pred_check_branch
      %570 = sbr.rel (0) target = $region29
    $region28: #{tpu_custom_call.1} parent=1 // pred_region
      %s572 = ssub.s32 32, 32
      %573 = vsyncadd [#allocation4], %s572
      %s575 = sshll.u32 [#allocation3], 4
      %s576 = int_to_ptr.vmem [resolvable:$true] %s575
      %578 = dma.vmem_to_hbm [thread:$0]  %s576, 32, %s4, [#allocation4]
    $region29: #{tpu_custom_call.1} parent=1 // pred_fallthru
      _
    // Predicated region
    $region30: #{tpu_custom_call.1} parent=1 // pred_check
      _
    $region31: #{tpu_custom_call.1} parent=1 // pred_check_branch
      %580 = sbr.rel (0) target = $region33
    $region32: #{tpu_custom_call.1} parent=1 // pred_region
      %581 = dma.done [#allocation4], 32
    $region33: #{tpu_custom_call.1} parent=1 // pred_fallthru
      _
    %582 = vsyncpa [#allocation4], 1

</llo_original>
